<compile_context>
chip_gen: v5e
topology: v5e:2x2
jax: 0.10.0
libtpu: 0.0.40
codegen_flags: <defaults>
</compile_context>

<pallas_src>
import functools

import jax
import jax.numpy as jnp
from jax import lax
from jax.experimental import pallas as pl
from jax.experimental.pallas import tpu as pltpu

_MASK_VALUE = -10000000.0  # matches the PyTorch module's replace value


def _round_up(x, m):
    return ((x + m - 1) // m) * m


def _tiling(n, c, tile_n=None):
    """Lane-dense class padding and row-tile sizing."""
    c_pad = _round_up(c, 128)                      # 1000 -> 1024, lane dense
    if tile_n is None:
        # Up to 512 rows/tile: a (512, 1024) f32 tile is 2 MiB; logits+uniform
        # double-buffered is ~8 MiB, well inside the scoped VMEM limit.
        tile_n = min(512, _round_up(max(n, 1), 8))
    tile_n = _round_up(max(int(tile_n), 8), 8)
    n_pad = _round_up(max(n, 1), tile_n)
    return tile_n, n_pad, c_pad, n_pad // tile_n


def _seql_kernel(cw_ref, x_ref, u_ref, tgt_ref, out_ref, *,
                 n_total, n_classes, tile_n, c_pad, gamma):
    i = pl.program_id(0)

    x = x_ref[...].astype(jnp.float32)        # (tile_n, c_pad), bf16 -> f32 here
    u = u_ref[...]                            # (tile_n, c_pad) f32 uniform [0,1)
    cw = cw_ref[...]                          # (1, c_pad) in {0, 1}
    tgt = tgt_ref[...]                        # (tile_n, 1) int32

    col = lax.broadcasted_iota(jnp.int32, (tile_n, c_pad), 1)
    is_gt = col == tgt                        # one-hot mask of the target class
    valid_class = col < n_classes             # drop lane padding (C -> c_pad)
    over = u > jnp.float32(gamma)             # random survivors
    keep = ((cw > 0.0) | over | is_gt) & valid_class
    xm = jnp.where(keep, x, jnp.float32(_MASK_VALUE))

    # Cross entropy per row: logsumexp(xm) - xm[target]  (mean is done outside).
    row_max = jnp.max(xm, axis=-1, keepdims=True)
    lse = row_max + jnp.log(jnp.sum(jnp.exp(xm - row_max), axis=-1, keepdims=True))
    tgt_logit = jnp.sum(jnp.where(is_gt, xm, 0.0), axis=-1, keepdims=True)
    per_row = lse - tgt_logit                 # (tile_n, 1)

    # Rows that are pure batch padding must not contribute to the partial sum.
    row = i * tile_n + lax.broadcasted_iota(jnp.int32, (tile_n, 1), 0)
    per_row = jnp.where(row < n_total, per_row, 0.0)

    partial = jnp.sum(per_row, axis=0, keepdims=True)             # (1, 1)
    lane0 = lax.broadcasted_iota(jnp.int32, (1, 128), 1) == 0
    out_ref[...] = lane0.astype(jnp.float32) * partial            # (1, 128)


def seql_loss(logits, target, class_weight, uniform, *, gamma=0.9, tile_n=None):
    """SEQL forward.

    logits:       (N, C) f32/bf16
    target:       (N,)   int
    class_weight: (C,)   0/1 floats (frequent-class mask)
    uniform:      (N, C) f32 uniform samples in [0, 1) -- the `torch.rand` draw
    """
    N, C = logits.shape
    tile_n, n_pad, c_pad, num_tiles = _tiling(N, C, tile_n)

    x = jnp.pad(logits, ((0, n_pad - N), (0, c_pad - C)))          # keep input dtype
    u = jnp.pad(uniform.astype(jnp.float32), ((0, n_pad - N), (0, c_pad - C)))
    cw = jnp.pad(class_weight.astype(jnp.float32), (0, c_pad - C)).reshape(1, c_pad)
    tgt = jnp.pad(target.astype(jnp.int32), (0, n_pad - N)).reshape(n_pad, 1)

    kernel = functools.partial(
        _seql_kernel, n_total=N, n_classes=C, tile_n=tile_n, c_pad=c_pad,
        gamma=float(gamma))

    grid_spec = pl.GridSpec(
        grid=(num_tiles,),
        in_specs=[
            pl.BlockSpec((1, c_pad), lambda i: (0, 0)),            # class_weight
            pl.BlockSpec((tile_n, c_pad), lambda i: (i, 0)),       # logits tile
            pl.BlockSpec((tile_n, c_pad), lambda i: (i, 0)),       # uniform tile
            pl.BlockSpec((tile_n, 1), lambda i: (i, 0)),           # targets tile
        ],
        out_specs=pl.BlockSpec((1, 128), lambda i: (0, i)),        # per-tile partial
    )

    itemsize = jnp.dtype(logits.dtype).itemsize
    cost = pl.CostEstimate(
        flops=8 * n_pad * c_pad,
        transcendentals=n_pad * c_pad,                             # the exp
        bytes_accessed=n_pad * c_pad * (itemsize + 4) + n_pad * 4
                       + num_tiles * (c_pad + 128) * 4,
    )

    partials = pl.pallas_call(
        kernel,
        out_shape=jax.ShapeDtypeStruct((1, 128 * num_tiles), jnp.float32),
        grid_spec=grid_spec,
        compiler_params=pltpu.CompilerParams(
            dimension_semantics=("parallel",),   # tiles are independent partials
            vmem_limit_bytes=32 * 1024 * 1024,
        ),
        cost_estimate=cost,
    )(cw, x, u, tgt)

    return jnp.sum(partials) / jnp.float32(N)


def _reference_seql(logits, target, class_weight, uniform, gamma=0.9):
    """Pure-JAX SEQL reference consuming the same uniform draw."""
    N, C = logits.shape
    x = logits.astype(jnp.float32)
    not_ignored = jnp.broadcast_to(
        class_weight.reshape(1, C).astype(jnp.float32), (N, C))
    over_prob = (uniform > gamma).astype(jnp.float32)
    is_gt = jax.nn.one_hot(target, C, dtype=jnp.float32)
    weights = ((not_ignored + over_prob + is_gt) > 0).astype(jnp.float32)
    xm = x * weights + _MASK_VALUE * (1.0 - weights)
    logz = jax.scipy.special.logsumexp(xm, axis=-1)
    nll = logz - xm[jnp.arange(N), target]
    return jnp.mean(nll)


if __name__ == "__main__":
    gamma = 0.9
    lambda_n = 0.00043
    N, C = 8, 1000  # the module hard-codes 1000 classes

    # Deterministic synthetic long-tailed class distribution -> class_weight.
    # TODO(synk): real counts come from ./data/ImageNet_LT/ImageNet_LT_train.txt.
    idx = jnp.arange(C, dtype=jnp.float32)
    counts = jnp.floor(1280.0 * jnp.exp(-idx / 120.0)) + 5.0
    prob = counts / jnp.sum(counts)
    class_weight = (prob > lambda_n).astype(jnp.float32)

    key = jax.random.PRNGKey(0)
    k_logit, k_tgt, k_rand = jax.random.split(key, 3)
    logits = jax.random.normal(k_logit, (N, C), dtype=jnp.float32).astype(jnp.bfloat16)
    target = jax.random.randint(k_tgt, (N,), 0, C, dtype=jnp.int32)
    uniform = jax.random.uniform(k_rand, (N, C), dtype=jnp.float32)

    loss = seql_loss(logits, target, class_weight, uniform, gamma=gamma)
    jax.block_until_ready(loss)

    # The reference consumes the exact same uniform draw -> bit-identical mask.
    ref = _reference_seql(logits, target, class_weight, uniform, gamma=gamma)
    assert jnp.allclose(loss, ref, rtol=1e-4, atol=1e-4), (float(loss), float(ref))

    print("KERNEL_OK")
</pallas_src>

<mosaic_0001>
module attributes {stable_mosaic.version = 11 : i64} {
  func.func @_seql_kernel(%arg0: i32, %arg1: memref<1x1024xf32, #tpu.memory_space<vmem>>, %arg2: memref<8x1024xbf16, #tpu.memory_space<vmem>>, %arg3: memref<8x1024xf32, #tpu.memory_space<vmem>>, %arg4: memref<8x1xi32, #tpu.memory_space<vmem>>, %arg5: memref<1x128xf32, #tpu.memory_space<vmem>>) attributes {dimension_semantics = [#tpu.dimension_semantics<parallel>], iteration_bounds = array<i64: 1>, scalar_prefetch = 0 : i64, scratch_operands = 0 : i64, tpu.core_type = #tpu.core_type<tc>, window_params = [{pipeline_mode = #tpu.pipeline_mode<synchronous>, transform_indices = @transform_0, window_bounds = array<i64: 1, 1024>}, {transform_indices = @transform_1, window_bounds = array<i64: 8, 1024>}, {transform_indices = @transform_2, window_bounds = array<i64: 8, 1024>}, {transform_indices = @transform_3, window_bounds = array<i64: 8, 1>}, {transform_indices = @transform_4, window_bounds = array<i64: 1, 128>}]} {
    %c0 = arith.constant 0 : index
    %c0_0 = arith.constant 0 : index
    %0 = vector.load %arg2[%c0, %c0_0] : memref<8x1024xbf16, #tpu.memory_space<vmem>>, vector<8x1024xbf16>
    %1 = arith.extf %0 : vector<8x1024xbf16> to vector<8x1024xf32>
    %c0_1 = arith.constant 0 : index
    %c0_2 = arith.constant 0 : index
    %2 = vector.load %arg3[%c0_1, %c0_2] : memref<8x1024xf32, #tpu.memory_space<vmem>>, vector<8x1024xf32>
    %c0_3 = arith.constant 0 : index
    %c0_4 = arith.constant 0 : index
    %3 = vector.load %arg1[%c0_3, %c0_4] : memref<1x1024xf32, #tpu.memory_space<vmem>>, vector<1x1024xf32>
    %c0_5 = arith.constant 0 : index
    %c0_6 = arith.constant 0 : index
    %4 = vector.load %arg4[%c0_5, %c0_6] : memref<8x1xi32, #tpu.memory_space<vmem>>, vector<8x1xi32>
    %5 = tpu.iota {dimensions = array<i32: 1>} : vector<8x1024xi32>
    %6 = vector.broadcast %4 : vector<8x1xi32> to vector<8x1024xi32>
    %7 = arith.cmpi eq, %5, %6 : vector<8x1024xi32>
    %c1000_i32 = arith.constant 1000 : i32
    %8 = vector.broadcast %c1000_i32 : i32 to vector<8x1024xi32>
    %9 = arith.cmpi slt, %5, %8 : vector<8x1024xi32>
    %cst = arith.constant 0.899999976 : f32
    %10 = vector.broadcast %cst : f32 to vector<8x1024xf32>
    %11 = arith.cmpf ogt, %2, %10 : vector<8x1024xf32>
    %cst_7 = arith.constant 0.000000e+00 : f32
    %12 = vector.broadcast %cst_7 : f32 to vector<1x1024xf32>
    %13 = arith.cmpf ogt, %3, %12 : vector<1x1024xf32>
    %14 = vector.broadcast %13 : vector<1x1024xi1> to vector<8x1024xi1>
    %15 = arith.ori %14, %11 : vector<8x1024xi1>
    %16 = arith.ori %15, %7 : vector<8x1024xi1>
    %17 = arith.andi %16, %9 : vector<8x1024xi1>
    %cst_8 = arith.constant -1.000000e+07 : f32
    %18 = vector.broadcast %cst_8 : f32 to vector<8x1024xf32>
    %19 = arith.select %17, %1, %18 : vector<8x1024xi1>, vector<8x1024xf32>
    %cst_9 = arith.constant dense<0xFF800000> : vector<8xf32>
    %20 = vector.multi_reduction <maximumf>, %19, %cst_9 [1] : vector<8x1024xf32> to vector<8xf32>
    %21 = vector.shape_cast %20 : vector<8xf32> to vector<8x1xf32>
    %22 = vector.broadcast %21 : vector<8x1xf32> to vector<8x1024xf32>
    %23 = arith.subf %19, %22 : vector<8x1024xf32>
    %24 = math.exp %23 : vector<8x1024xf32>
    %cst_10 = arith.constant dense<0.000000e+00> : vector<8xf32>
    %25 = vector.multi_reduction <add>, %24, %cst_10 [1] : vector<8x1024xf32> to vector<8xf32>
    %26 = vector.shape_cast %25 : vector<8xf32> to vector<8x1xf32>
    %27 = math.log %26 : vector<8x1xf32>
    %28 = arith.addf %21, %27 : vector<8x1xf32>
    %cst_11 = arith.constant 0.000000e+00 : f32
    %29 = vector.broadcast %cst_11 : f32 to vector<8x1024xf32>
    %30 = arith.select %7, %19, %29 : vector<8x1024xi1>, vector<8x1024xf32>
    %cst_12 = arith.constant dense<0.000000e+00> : vector<8xf32>
    %31 = vector.multi_reduction <add>, %30, %cst_12 [1] : vector<8x1024xf32> to vector<8xf32>
    %32 = vector.shape_cast %31 : vector<8xf32> to vector<8x1xf32>
    %33 = arith.subf %28, %32 : vector<8x1xf32>
    %c8_i32 = arith.constant 8 : i32
    %34 = arith.muli %arg0, %c8_i32 : i32
    %35 = tpu.iota {dimensions = array<i32: 0>} : vector<8x1xi32>
    %36 = vector.broadcast %34 : i32 to vector<8x1xi32>
    %37 = arith.addi %36, %35 : vector<8x1xi32>
    %c8_i32_13 = arith.constant 8 : i32
    %38 = vector.broadcast %c8_i32_13 : i32 to vector<8x1xi32>
    %39 = arith.cmpi slt, %37, %38 : vector<8x1xi32>
    %cst_14 = arith.constant 0.000000e+00 : f32
    %40 = vector.broadcast %cst_14 : f32 to vector<8x1xf32>
    %41 = arith.select %39, %33, %40 : vector<8x1xi1>, vector<8x1xf32>
    %cst_15 = arith.constant dense<0.000000e+00> : vector<1xf32>
    %42 = vector.multi_reduction <add>, %41, %cst_15 [0] : vector<8x1xf32> to vector<1xf32>
    %43 = vector.shape_cast %42 : vector<1xf32> to vector<1x1xf32>
    %44 = tpu.iota {dimensions = array<i32: 1>} : vector<1x128xi32>
    %c0_i32 = arith.constant 0 : i32
    %45 = vector.broadcast %c0_i32 : i32 to vector<1x128xi32>
    %46 = arith.cmpi eq, %44, %45 : vector<1x128xi32>
    %47 = arith.extui %46 : vector<1x128xi1> to vector<1x128xi32>
    %48 = arith.sitofp %47 : vector<1x128xi32> to vector<1x128xf32>
    %49 = vector.broadcast %43 : vector<1x1xf32> to vector<1x128xf32>
    %50 = arith.mulf %48, %49 : vector<1x128xf32>
    %c0_16 = arith.constant 0 : index
    %c0_17 = arith.constant 0 : index
    %51 = vector.load %arg5[%c0_16, %c0_17] : memref<1x128xf32, #tpu.memory_space<vmem>>, vector<1x128xf32>
    tpu.vector_store %arg5[%c0_16, %c0_17], %50 {strides = array<i32>} : memref<1x128xf32, #tpu.memory_space<vmem>>, vector<1x128xf32>,
    return
  }
  func.func @transform_0(%arg0: i32) -> (i32, i32) {
    %c0_i32 = arith.constant 0 : i32
    %c0_i32_0 = arith.constant 0 : i32
    %c0_i32_1 = arith.constant 0 : i32
    return %c0_i32, %c0_i32_0 : i32, i32
  }
  func.func @transform_1(%arg0: i32) -> (i32, i32) {
    %c0_i32 = arith.constant 0 : i32
    %c0_i32_0 = arith.constant 0 : i32
    return %arg0, %c0_i32 : i32, i32
  }
  func.func @transform_2(%arg0: i32) -> (i32, i32) {
    %c0_i32 = arith.constant 0 : i32
    %c0_i32_0 = arith.constant 0 : i32
    return %arg0, %c0_i32 : i32, i32
  }
  func.func @transform_3(%arg0: i32) -> (i32, i32) {
    %c0_i32 = arith.constant 0 : i32
    %c0_i32_0 = arith.constant 0 : i32
    return %arg0, %c0_i32 : i32, i32
  }
  func.func @transform_4(%arg0: i32) -> (i32, i32) {
    %c0_i32 = arith.constant 0 : i32
    %c0_i32_0 = arith.constant 0 : i32
    return %c0_i32, %arg0 : i32, i32
  }
}

</mosaic_0001>

<llo_original>
// kernel: tpu_custom_call.1
$region0: #{tpu_custom_call.1}
  #allocation0 [shape = 'u32[]', space=smem, size = 0x4, offset = 0x4, fixed_abs, tag = 'smem constant byte address 0x4 - core index']
  #allocation1 [shape = 'u32[72,128]{1,0:T(1,128)}', space=vmem, size = 0x9000, scoped, tag = 'internal scratch']
  %s0 = inlined_call_operand.vmem [shape: f32[1,1024], index: 0, kind: input, shape index: {}]
  %s1 = inlined_call_operand.hbm [shape: bf16[8,1024], index: 1, kind: input, shape index: {}]
  %s2 = inlined_call_operand.hbm [shape: f32[8,1024], index: 2, kind: input, shape index: {}]
  %s3 = inlined_call_operand.vmem [shape: s32[8,1], index: 3, kind: input, shape index: {}]
  %s4 = inlined_call_operand.hbm [shape: f32[1,128], index: 4, kind: output, shape index: {}]
  %s5 = sld [smem:[#allocation0]]
  $region34: #{tpu_custom_call.1} parent=0
    _
  %s7 = ssub.s32 1, %s5
  %s8 = scalar_select 0, %s7, %s5
  $region1: #{tpu_custom_call.1} parent=0
    #allocation2 [shape = 'u8[16384]{0}', space=vmem, size = 0x4000, scoped, tag = 'input window, operand 1, single buffered']
    #allocation3 [shape = 's32[1]{0}', space=sflag, size = 0x4, scoped, tag = 'scoped memory for tpu_custom_call.1']
    #allocation4 [shape = 's32[1]{0}', space=sflag, size = 0x4, scoped, tag = 'scoped memory for tpu_custom_call.1']
    #allocation5 [shape = 'u8[32768]{0}', space=vmem, size = 0x8000, scoped, tag = 'input window, operand 2, single buffered']
    #allocation6 [shape = 's32[1]{0}', space=sflag, size = 0x4, scoped, tag = 'scoped memory for tpu_custom_call.1']
    #allocation7 [shape = 'u8[512]{0}', space=vmem, size = 0x400, scoped, tag = 'output window, operand 0, single buffered']
    %9 = vsyncpa [#allocation3], 0
    %10 = vsyncpa [#allocation6], 0
    %11 = vsyncpa [#allocation4], 0
    // Predicated region
    $region2: #{tpu_custom_call.1} parent=1 // pred_check
      _
    $region3: #{tpu_custom_call.1} parent=1 // pred_check_branch
      %13 = sbr.rel (0) target = $region5
    $region4: #{tpu_custom_call.1} parent=1 // pred_region
      _
    $region5: #{tpu_custom_call.1} parent=1 // pred_fallthru
      _
    // Predicated region
    $region6: #{tpu_custom_call.1} parent=1 // pred_check
      _
    $region7: #{tpu_custom_call.1} parent=1 // pred_check_branch
      %15 = sbr.rel (0) target = $region9
    $region8: #{tpu_custom_call.1} parent=1 // pred_region
      %17 = vsyncadd [#allocation3], 0
      %s19 = sshll.u32 %s1, 4
      %s20 = int_to_ptr.hbm [resolvable:$true] %s19
      %s21 = sshll.u32 [#allocation2], 4
      %s22 = int_to_ptr.vmem [resolvable:$true] %s21
      %24 = dma.hbm_to_vmem [thread:$0]  %s20, 512, %s22, [#allocation3]
    $region9: #{tpu_custom_call.1} parent=1 // pred_fallthru
      _
    // Predicated region
    $region10: #{tpu_custom_call.1} parent=1 // pred_check
      _
    $region11: #{tpu_custom_call.1} parent=1 // pred_check_branch
      %26 = sbr.rel (0) target = $region13
    $region12: #{tpu_custom_call.1} parent=1 // pred_region
      %28 = vsyncadd [#allocation6], 0
      %s30 = sshll.u32 %s2, 4
      %s31 = int_to_ptr.hbm [resolvable:$true] %s30
      %s32 = sshll.u32 [#allocation5], 4
      %s33 = int_to_ptr.vmem [resolvable:$true] %s32
      %35 = dma.hbm_to_vmem [thread:$0]  %s31, 1024, %s33, [#allocation6]
    $region13: #{tpu_custom_call.1} parent=1 // pred_fallthru
      _
    // Predicated region
    $region14: #{tpu_custom_call.1} parent=1 // pred_check
      _
    $region15: #{tpu_custom_call.1} parent=1 // pred_check_branch
      %37 = sbr.rel (0) target = $region17
    $region16: #{tpu_custom_call.1} parent=1 // pred_region
      _
    $region17: #{tpu_custom_call.1} parent=1 // pred_fallthru
      _
    // Predicated region
    $region18: #{tpu_custom_call.1} parent=1 // pred_check
      _
    $region19: #{tpu_custom_call.1} parent=1 // pred_check_branch
      %39 = sbr.rel (0) target = $region21
    $region20: #{tpu_custom_call.1} parent=1 // pred_region
      %41 = dma.done [#allocation3], 512
    $region21: #{tpu_custom_call.1} parent=1 // pred_fallthru
      _
    // Predicated region
    $region22: #{tpu_custom_call.1} parent=1 // pred_check
      _
    $region23: #{tpu_custom_call.1} parent=1 // pred_check_branch
      %43 = sbr.rel (0) target = $region25
    $region24: #{tpu_custom_call.1} parent=1 // pred_region
      %45 = dma.done [#allocation6], 1024
    $region25: #{tpu_custom_call.1} parent=1 // pred_fallthru
      _
    %v46 = vld [vmem:[#allocation2] sm:$0xff]
    %v47 = vld [vmem:[#allocation2 + $0x8] sm:$0xff]
    %v48 = vld [vmem:[#allocation2 + $0x10] sm:$0xff]
    %v49 = vld [vmem:[#allocation2 + $0x18] sm:$0xff]
    %v50 = vunpack.c.l.bf16 %v46
    %v51 = vunpack.c.h.bf16 %v46
    %v52 = vunpack.c.l.bf16 %v47
    %v53 = vunpack.c.h.bf16 %v47
    %v54 = vunpack.c.l.bf16 %v48
    %v55 = vunpack.c.h.bf16 %v48
    %v56 = vunpack.c.l.bf16 %v49
    %v57 = vunpack.c.h.bf16 %v49
    %v58 = vld [vmem:[#allocation5] sm:$0xff]
    %v59 = vld [vmem:[#allocation5 + $0x8] sm:$0xff]
    %v60 = vld [vmem:[#allocation5 + $0x10] sm:$0xff]
    %v61 = vld [vmem:[#allocation5 + $0x18] sm:$0xff]
    %v62 = vld [vmem:[#allocation5 + $0x20] sm:$0xff]
    %v63 = vld [vmem:[#allocation5 + $0x28] sm:$0xff]
    %v64 = vld [vmem:[#allocation5 + $0x30] sm:$0xff]
    %v65 = vld [vmem:[#allocation5 + $0x38] sm:$0xff]
    %v66 = vld [vmem:[%s0] sm:$0xff]
    %v67 = vld [vmem:[%s3] sm:$0xff]
    %v68 = vlaneseq
    %v69 = vand.u32 %v68, 127
    %v70 = vadd.s32 %v69, 128
    %v71 = vadd.s32 %v69, 256
    %v72 = vadd.s32 %v69, 384
    %v73 = vadd.s32 %v69, 512
    %v74 = vadd.s32 %v69, 640
    %v75 = vadd.s32 %v69, 768
    %v76 = vadd.s32 %v69, 896
    %77 = vset.pattern.permute.xlu0 0
    %78 = vperm.xlu0 %77, %v67
    %v79 = vpop.permute.xlu0 %78
    %vm80 = vcmp.eq.s32.totalorder %v69, %v79
    %vm81 = vcmp.eq.s32.totalorder %v70, %v79
    %vm82 = vcmp.eq.s32.totalorder %v71, %v79
    %vm83 = vcmp.eq.s32.totalorder %v72, %v79
    %vm84 = vcmp.eq.s32.totalorder %v73, %v79
    %vm85 = vcmp.eq.s32.totalorder %v74, %v79
    %vm86 = vcmp.eq.s32.totalorder %v75, %v79
    %vm87 = vcmp.eq.s32.totalorder %v76, %v79
    %vm88 = vcmp.lt.s32.totalorder %v69, 1000
    %vm89 = vcmp.lt.s32.totalorder %v70, 1000
    %vm90 = vcmp.lt.s32.totalorder %v71, 1000
    %vm91 = vcmp.lt.s32.totalorder %v72, 1000
    %vm92 = vcmp.lt.s32.totalorder %v73, 1000
    %vm93 = vcmp.lt.s32.totalorder %v74, 1000
    %vm94 = vcmp.lt.s32.totalorder %v75, 1000
    %vm95 = vcmp.lt.s32.totalorder %v76, 1000
    %vm96 = vcmp.gt.f32.partialorder %v58, 0.9
    %vm97 = vcmp.gt.f32.partialorder %v59, 0.9
    %vm98 = vcmp.gt.f32.partialorder %v60, 0.9
    %vm99 = vcmp.gt.f32.partialorder %v61, 0.9
    %vm100 = vcmp.gt.f32.partialorder %v62, 0.9
    %vm101 = vcmp.gt.f32.partialorder %v63, 0.9
    %vm102 = vcmp.gt.f32.partialorder %v64, 0.9
    %vm103 = vcmp.gt.f32.partialorder %v65, 0.9
    %vm104 = vcmp.gt.f32.partialorder %v66, 0.0
    %v105 = vsel %vm104, 1, 0
    %v106 = vperm.slane %v105, 0
    %v107 = vperm.slane %v105, 1
    %v108 = vperm.slane %v105, 2
    %v109 = vperm.slane %v105, 3
    %v110 = vperm.slane %v105, 4
    %v111 = vperm.slane %v105, 5
    %v112 = vperm.slane %v105, 6
    %v113 = vperm.slane %v105, 7
    %vm114 = vcmp.eq.s32.totalorder %v106, 1
    %vm115 = vcmp.eq.s32.totalorder %v107, 1
    %vm116 = vcmp.eq.s32.totalorder %v108, 1
    %vm117 = vcmp.eq.s32.totalorder %v109, 1
    %vm118 = vcmp.eq.s32.totalorder %v110, 1
    %vm119 = vcmp.eq.s32.totalorder %v111, 1
    %vm120 = vcmp.eq.s32.totalorder %v112, 1
    %vm121 = vcmp.eq.s32.totalorder %v113, 1
    %vm122 = vmor %vm114, %vm96
    %vm123 = vmor %vm115, %vm97
    %vm124 = vmor %vm116, %vm98
    %vm125 = vmor %vm117, %vm99
    %vm126 = vmor %vm118, %vm100
    %vm127 = vmor %vm119, %vm101
    %vm128 = vmor %vm120, %vm102
    %vm129 = vmor %vm121, %vm103
    %vm130 = vmor %vm122, %vm80
    %vm131 = vmor %vm123, %vm81
    %vm132 = vmor %vm124, %vm82
    %vm133 = vmor %vm125, %vm83
    %vm134 = vmor %vm126, %vm84
    %vm135 = vmor %vm127, %vm85
    %vm136 = vmor %vm128, %vm86
    %vm137 = vmor %vm129, %vm87
    %vm138 = vmand %vm130, %vm88
    %vm139 = vmand %vm131, %vm89
    %vm140 = vmand %vm132, %vm90
    %vm141 = vmand %vm133, %vm91
    %vm142 = vmand %vm134, %vm92
    %vm143 = vmand %vm135, %vm93
    %vm144 = vmand %vm136, %vm94
    %vm145 = vmand %vm137, %vm95
    %v146 = vsel %vm138, %v50, -10000000.0
    %v147 = vsel %vm139, %v51, -10000000.0
    %v148 = vsel %vm140, %v52, -10000000.0
    %v149 = vsel %vm141, %v53, -10000000.0
    %v150 = vsel %vm142, %v54, -10000000.0
    %v151 = vsel %vm143, %v55, -10000000.0
    %v152 = vsel %vm144, %v56, -10000000.0
    %v153 = vsel %vm145, %v57, -10000000.0
    %v154 = vmax.f32 %v146, %v150
    %v155 = vmax.f32 %v147, %v151
    %v156 = vmax.f32 %v148, %v152
    %v157 = vmax.f32 %v149, %v153
    %v158 = vmax.f32 %v154, %v155
    %v159 = vmax.f32 %v156, %v157
    %v160 = vmax.f32 %v158, %v159
    %161 = vmax.xlane.f32.xlu0 %v160
    %v162 = vpop.xlane.xlu0 %161
    %v163 = vsub.f32 %v146, %v162
    %v164 = vsub.f32 %v147, %v162
    %v165 = vsub.f32 %v148, %v162
    %v166 = vsub.f32 %v149, %v162
    %v167 = vsub.f32 %v150, %v162
    %v168 = vsub.f32 %v151, %v162
    %v169 = vsub.f32 %v152, %v162
    %v170 = vsub.f32 %v153, %v162
    %v171 = vmul.f32 %v163, 1.442695
    %v172 = vpow.pop %v171
    %v173 = vmul.f32 %v164, 1.442695
    %v174 = vpow.pop %v173
    %v175 = vmul.f32 %v165, 1.442695
    %v176 = vpow.pop %v175
    %v177 = vmul.f32 %v166, 1.442695
    %v178 = vpow.pop %v177
    %v179 = vmul.f32 %v167, 1.442695
    %v180 = vpow.pop %v179
    %v181 = vmul.f32 %v168, 1.442695
    %v182 = vpow.pop %v181
    %v183 = vmul.f32 %v169, 1.442695
    %v184 = vpow.pop %v183
    %v185 = vmul.f32 %v170, 1.442695
    %v186 = vpow.pop %v185
    %v187 = vadd.f32 %v172, %v174
    %v188 = vadd.f32 %v187, %v176
    %v189 = vadd.f32 %v188, %v178
    %v190 = vadd.f32 %v189, %v180
    %v191 = vadd.f32 %v190, %v182
    %v192 = vadd.f32 %v191, %v184
    %v193 = vadd.f32 %v192, %v186
    %194 = vadd.xlane.f32.xlu0 %v193
    %v195 = vpop.xlane.xlu0 %194
    %v196 = vlog2.pop %v195
    %v197 = vmul.f32 %v196, 0.6931472
    %v198 = vadd.f32 %v162, %v197
    %v199 = vsel %vm80, %v146, 0.0
    %v200 = vsel %vm81, %v147, 0.0
    %v201 = vsel %vm82, %v148, 0.0
    %v202 = vsel %vm83, %v149, 0.0
    %v203 = vsel %vm84, %v150, 0.0
    %v204 = vsel %vm85, %v151, 0.0
    %v205 = vsel %vm86, %v152, 0.0
    %v206 = vsel %vm87, %v153, 0.0
    %v207 = vadd.f32 %v199, %v200
    %v208 = vadd.f32 %v207, %v201
    %v209 = vadd.f32 %v208, %v202
    %v210 = vadd.f32 %v209, %v203
    %v211 = vadd.f32 %v210, %v204
    %v212 = vadd.f32 %v211, %v205
    %v213 = vadd.f32 %v212, %v206
    %214 = vadd.xlane.f32.xlu0 %v213
    %v215 = vpop.xlane.xlu0 %214
    %v216 = vsub.f32 %v198, %v215
    %s217 = smul.u32 0, 8
    %v218 = vlaneseq
    %v219 = vshrl.u32 %v218, 7
    %v220 = vstv %s217
    %v221 = vadd.s32 %v220, %v219
    %vm222 = vcmp.lt.s32.totalorder %v221, 8
    %v223 = vsel %vm222, %v216, 0.0
    %v224 = vrot.slane %v223, 4
    %v225 = vadd.f32 %v223, %v224
    %v226 = vrot.slane %v225, 2
    %v227 = vadd.f32 %v225, %v226
    %v228 = vrot.slane %v227, 1
    %v229 = vadd.f32 %v227, %v228
    %vm230 = vcmp.eq.s32.totalorder %v69, 0
    %v231 = vsel %vm230, 1, 0
    %v232 = vcvt.s32.f32 %v231
    %v233 = vmul.f32 %v232, %v229
    %234 = vst [vmem:[#allocation7] sm:$0x1] %v233
    // Predicated region
    $region26: #{tpu_custom_call.1} parent=1 // pred_check
      _
    $region27: #{tpu_custom_call.1} parent=1 // pred_check_branch
      %236 = sbr.rel (0) target = $region29
    $region28: #{tpu_custom_call.1} parent=1 // pred_region
      %238 = vsyncadd [#allocation4], 0
      %s240 = sshll.u32 [#allocation7], 4
      %s241 = int_to_ptr.vmem [resolvable:$true] %s240
      %s242 = sshll.u32 %s4, 4
      %s243 = int_to_ptr.hbm [resolvable:$true] %s242
      %245 = dma.vmem_to_hbm [thread:$0]  %s241, 16, %s243, [#allocation4]
    $region29: #{tpu_custom_call.1} parent=1 // pred_fallthru
      _
    // Predicated region
    $region30: #{tpu_custom_call.1} parent=1 // pred_check
      _
    $region31: #{tpu_custom_call.1} parent=1 // pred_check_branch
      %247 = sbr.rel (0) target = $region33
    $region32: #{tpu_custom_call.1} parent=1 // pred_region
      %249 = dma.done [#allocation4], 16
    $region33: #{tpu_custom_call.1} parent=1 // pred_fallthru
      _
    %250 = vsyncpa [#allocation3], 1
    %251 = vsyncpa [#allocation6], 1
    %252 = vsyncpa [#allocation4], 1

</llo_original>
